<compile_context>
chip_gen: v6e
topology: v6e:2x2x1
jax: 0.10.0
libtpu: 0.0.40
codegen_flags: <defaults>
</compile_context>

<pallas_src>
import jax
import jax.numpy as jnp
from jax import lax
from jax.experimental import pallas as pl
from jax.experimental.pallas import tpu as pltpu


_SUBLANE = 16   # row-tile alignment: covers f32 (8) and bf16 (16) sublane packing
_LANES = 128


def _round_up(x, m):
    return (x + m - 1) // m * m


def _edge_embed_kernel(idx_ref, table_ref, out_ref):
    """Lane-packed embedding gather.

    idx_ref:   (TNr, P)   int32 -- P packed token ids per output row
    table_ref: (P*K, P*D) block-diagonal embedding table (VMEM-resident across the grid)
    out_ref:   (TNr, P*D) lane-dense output rows (P*D == 128 when D divides 128)
    """
    idx = idx_ref[...]
    table = table_ref[...]
    tnr, p = idx.shape
    pk = table.shape[0]
    k = pk // p

    # Multi-hot (TNr, P*K): row r has a 1 at column p*K + idx[r, p] for each packed token p.
    iota = lax.broadcasted_iota(jnp.int32, (tnr, pk), 1)
    hit = iota == idx[:, 0:1]
    for pp in range(1, p):                       # static unroll; P is tiny (128 // D)
        hit = jnp.logical_or(hit, iota == (idx[:, pp:pp + 1] + pp * k))

    # Single fused MXU gather; 0/1 weights make it exact for any float table dtype.
    # (Out-of-range ids yield silent zero rows instead of raising like nn.Embedding.)
    onehot = hit.astype(table.dtype)
    out_ref[...] = jnp.dot(
        onehot, table, preferred_element_type=jnp.float32
    ).astype(out_ref.dtype)


def edge_embedding(data, embed_table, fusion_type="concat", *, tile_n=4096):
    """EdgeEmbedding.forward: embed_table[data.long()] ('concat'/'add' over a 1-elem list)."""
    if fusion_type not in ("concat", "add"):
        raise ValueError(f"Get wrong fusion type {fusion_type}")
    # With exactly one embedding in the list, 'concat' and 'add' both reduce to the lookup.

    orig_shape = data.shape
    K, D = embed_table.shape
    dt = embed_table.dtype                       # output follows the weight dtype
    itemsize = jnp.dtype(dt).itemsize

    # Lane packing factor: P tokens per 128-lane output row; fallback P=1 if D !| 128.
    P = _LANES // D if (D < _LANES and _LANES % D == 0) else 1

    idx_flat = data.astype(jnp.int32).reshape(-1)
    N = idx_flat.shape[0]
    Nr = pl.cdiv(N, P)                           # packed output rows

    # Row tile: as large as tile_n tokens allow (amortize per-step overhead), capped so the
    # grid keeps >= 2 steps when possible ("parallel" axis shards across v7x's two TCs).
    max_rows = max(_SUBLANE, (max(tile_n, P) // P) // _SUBLANE * _SUBLANE)
    TNr = max(_SUBLANE, min(max_rows, _round_up(pl.cdiv(Nr, 2), _SUBLANE)))

    Nr_pad = _round_up(Nr, TNr)
    pad_tokens = Nr_pad * P - N
    if pad_tokens:
        idx_flat = jnp.pad(idx_flat, (0, pad_tokens))   # pad with valid id 0, sliced off below
    idx_rows = idx_flat.reshape(Nr_pad, P)

    # Block-diagonal table (P*K, P*D): copy p feeds lane block [p*D, (p+1)*D).
    table_bd = embed_table if P == 1 else jnp.kron(jnp.eye(P, dtype=dt), embed_table)

    grid = (Nr_pad // TNr,)

    cost = pl.CostEstimate(
        flops=2 * Nr_pad * (P * K) * (P * D),
        transcendentals=0,
        bytes_accessed=Nr_pad * P * 4 + Nr_pad * P * D * itemsize + (P * K) * (P * D) * itemsize,
    )

    # VMEM budget: resident table + double-buffered id/out tiles. Toy/medium sizes fit every
    # generation's default scoped VMEM; only raise the limit when a big table needs it
    # (kept well under v7x's 64 MiB physical VMEM).
    vmem_needed = (2 * TNr * P * D * itemsize          # out tiles (double-buffered)
                   + 2 * TNr * _LANES * 4              # id tiles (lane-padded)
                   + 2 * (P * K) * (P * D) * itemsize)  # table (counted twice, conservative)
    vmem_limit = min(vmem_needed + (4 << 20), 48 << 20) if vmem_needed > (16 << 20) else None
    # TODO(synk): for very large (K, D) tables, also tile the D axis instead of keeping the
    # whole block-diagonal table resident in VMEM.

    out = pl.pallas_call(
        _edge_embed_kernel,
        out_shape=jax.ShapeDtypeStruct((Nr_pad, P * D), dt),
        grid_spec=pltpu.PrefetchScalarGridSpec(
            num_scalar_prefetch=0,
            grid=grid,
            in_specs=[
                pl.BlockSpec((TNr, P), lambda i: (i, 0)),          # packed edge-type ids
                pl.BlockSpec((P * K, P * D), lambda i: (0, 0)),    # table: resident
            ],
            out_specs=pl.BlockSpec((TNr, P * D), lambda i: (i, 0)),
        ),
        compiler_params=pltpu.CompilerParams(
            dimension_semantics=("parallel",),                     # shard row loop across TCs
            vmem_limit_bytes=vmem_limit,
        ),
        cost_estimate=cost,
    )(idx_rows, table_bd)

    out = out.reshape(Nr_pad * P, D)[:N]
    return out.reshape(*orig_shape, D)


def _reference(data, embed_table):
    """Pure-JAX reference mirroring nn.Embedding lookup."""
    return embed_table[data.astype(jnp.int32)]


if __name__ == "__main__":
    key = jax.random.PRNGKey(0)
    k_idx, k_tab = jax.random.split(key)

    batch, seq = 2, 8                  # edges laid out as (batch, seq)
    num_edge_type, embed_size = 4, 32

    # nn.Embedding default init ~ N(0, 1); deterministic synthetic weights here.
    embed_table = jax.random.normal(k_tab, (num_edge_type, embed_size), dtype=jnp.float32)
    data = jax.random.randint(k_idx, (batch, seq), 0, num_edge_type)

    out = jax.block_until_ready(edge_embedding(data, embed_table, fusion_type="concat"))
    ref = _reference(data, embed_table)
    assert out.shape == (batch, seq, embed_size), out.shape
    assert out.dtype == embed_table.dtype, out.dtype
    assert jnp.allclose(out, ref, atol=1e-6, rtol=1e-6), float(jnp.max(jnp.abs(out - ref)))

    # 'add' fusion over the single-element embedding list must match too.
    out_add = jax.block_until_ready(edge_embedding(data, embed_table, fusion_type="add"))
    assert jnp.allclose(out_add, ref, atol=1e-6, rtol=1e-6)

    # Native-dtype passthrough: bf16 table -> bf16 output, still an exact lookup.
    table_bf16 = embed_table.astype(jnp.bfloat16)
    out_bf16 = jax.block_until_ready(edge_embedding(data, table_bf16, fusion_type="concat"))
    assert out_bf16.dtype == jnp.bfloat16
    assert jnp.array_equal(out_bf16, _reference(data, table_bf16))

    print("KERNEL_OK")
</pallas_src>

<mosaic_0001>
module attributes {stable_mosaic.version = 11 : i64} {
  func.func @_edge_embed_kernel(%arg0: i32, %arg1: memref<16x4xi32, #tpu.memory_space<vmem>>, %arg2: memref<16x128xf32, #tpu.memory_space<vmem>>, %arg3: memref<16x128xf32, #tpu.memory_space<vmem>>) attributes {dimension_semantics = [#tpu.dimension_semantics<parallel>], iteration_bounds = array<i64: 1>, scalar_prefetch = 0 : i64, scratch_operands = 0 : i64, tpu.core_type = #tpu.core_type<tc>, window_params = [{transform_indices = @transform_0, window_bounds = array<i64: 16, 4>}, {pipeline_mode = #tpu.pipeline_mode<synchronous>, transform_indices = @transform_1, window_bounds = array<i64: 16, 128>}, {transform_indices = @transform_2, window_bounds = array<i64: 16, 128>}]} {
    %c0 = arith.constant 0 : index
    %c0_0 = arith.constant 0 : index
    %0 = vector.load %arg1[%c0, %c0_0] : memref<16x4xi32, #tpu.memory_space<vmem>>, vector<16x4xi32>
    %c0_1 = arith.constant 0 : index
    %c0_2 = arith.constant 0 : index
    %1 = vector.load %arg2[%c0_1, %c0_2] : memref<16x128xf32, #tpu.memory_space<vmem>>, vector<16x128xf32>
    %2 = tpu.iota {dimensions = array<i32: 1>} : vector<16x16xi32>
    %3 = vector.extract_strided_slice %0 {offsets = [0, 0], sizes = [16, 1], strides = [1, 1]} : vector<16x4xi32> to vector<16x1xi32>
    %4 = vector.broadcast %3 : vector<16x1xi32> to vector<16x16xi32>
    %5 = arith.cmpi eq, %2, %4 : vector<16x16xi32>
    %6 = vector.extract_strided_slice %0 {offsets = [0, 1], sizes = [16, 1], strides = [1, 1]} : vector<16x4xi32> to vector<16x1xi32>
    %c4_i32 = arith.constant 4 : i32
    %7 = vector.broadcast %c4_i32 : i32 to vector<16x1xi32>
    %8 = arith.addi %6, %7 : vector<16x1xi32>
    %9 = vector.broadcast %8 : vector<16x1xi32> to vector<16x16xi32>
    %10 = arith.cmpi eq, %2, %9 : vector<16x16xi32>
    %11 = arith.ori %5, %10 : vector<16x16xi1>
    %12 = vector.extract_strided_slice %0 {offsets = [0, 2], sizes = [16, 1], strides = [1, 1]} : vector<16x4xi32> to vector<16x1xi32>
    %c8_i32 = arith.constant 8 : i32
    %13 = vector.broadcast %c8_i32 : i32 to vector<16x1xi32>
    %14 = arith.addi %12, %13 : vector<16x1xi32>
    %15 = vector.broadcast %14 : vector<16x1xi32> to vector<16x16xi32>
    %16 = arith.cmpi eq, %2, %15 : vector<16x16xi32>
    %17 = arith.ori %11, %16 : vector<16x16xi1>
    %18 = vector.extract_strided_slice %0 {offsets = [0, 3], sizes = [16, 1], strides = [1, 1]} : vector<16x4xi32> to vector<16x1xi32>
    %c12_i32 = arith.constant 12 : i32
    %19 = vector.broadcast %c12_i32 : i32 to vector<16x1xi32>
    %20 = arith.addi %18, %19 : vector<16x1xi32>
    %21 = vector.broadcast %20 : vector<16x1xi32> to vector<16x16xi32>
    %22 = arith.cmpi eq, %2, %21 : vector<16x16xi32>
    %23 = arith.ori %17, %22 : vector<16x16xi1>
    %24 = arith.extui %23 : vector<16x16xi1> to vector<16x16xi32>
    %25 = arith.sitofp %24 : vector<16x16xi32> to vector<16x16xf32>
    %cst = arith.constant dense<0.000000e+00> : vector<16x128xf32>
    %26 = tpu.matmul %25, %1, %cst {dimension_numbers = #tpu.dot_dimension_numbers<[1], [0], [0], [1], [0, 0, 1, 1], [], []>} : vector<16x16xf32>, vector<16x128xf32>, vector<16x128xf32> -> vector<16x128xf32>
    %c0_3 = arith.constant 0 : index
    %c0_4 = arith.constant 0 : index
    %27 = vector.load %arg3[%c0_3, %c0_4] : memref<16x128xf32, #tpu.memory_space<vmem>>, vector<16x128xf32>
    tpu.vector_store %arg3[%c0_3, %c0_4], %26 {strides = array<i32>} : memref<16x128xf32, #tpu.memory_space<vmem>>, vector<16x128xf32>,
    return
  }
  func.func @transform_0(%arg0: i32) -> (i32, i32) {
    %c0_i32 = arith.constant 0 : i32
    %c0_i32_0 = arith.constant 0 : i32
    return %arg0, %c0_i32 : i32, i32
  }
  func.func @transform_1(%arg0: i32) -> (i32, i32) {
    %c0_i32 = arith.constant 0 : i32
    %c0_i32_0 = arith.constant 0 : i32
    %c0_i32_1 = arith.constant 0 : i32
    return %c0_i32, %c0_i32_0 : i32, i32
  }
  func.func @transform_2(%arg0: i32) -> (i32, i32) {
    %c0_i32 = arith.constant 0 : i32
    %c0_i32_0 = arith.constant 0 : i32
    return %arg0, %c0_i32 : i32, i32
  }
}

</mosaic_0001>

<llo_original>
// kernel: tpu_custom_call.1
$region0: #{tpu_custom_call.1}
  #allocation0 [shape = 'u32[]', space=smem, size = 0x4, offset = 0x4, fixed_abs, tag = 'smem constant byte address 0x4 - core index']
  #allocation1 [shape = 'u32[144,128]{1,0:T(1,128)}', space=vmem, size = 0x12000, scoped, tag = 'internal scratch']
  %s0 = inlined_call_operand.vmem [shape: s32[16,4], index: 0, kind: input, shape index: {}]
  %s1 = inlined_call_operand.vmem [shape: f32[16,128], index: 1, kind: input, shape index: {}]
  %s2 = inlined_call_operand.hbm [shape: f32[16,128], index: 2, kind: output, shape index: {}]
  %s3 = sld [smem:[#allocation0]]
  $region18: #{tpu_custom_call.1} parent=0
    _
  %s5 = ssub.s32 1, %s3
  %s6 = scalar_select 0, %s5, %s3
  $region1: #{tpu_custom_call.1} parent=0
    #allocation2 [shape = 'u8[8192]{0}', space=vmem, size = 0x2000, scoped, tag = 'output window, operand 0, single buffered']
    #allocation3 [shape = 's32[1]{0}', space=sflag, size = 0x4, scoped, tag = 'scoped memory for tpu_custom_call.1']
    %7 = vsyncpa [#allocation3], 0
    // Predicated region
    $region2: #{tpu_custom_call.1} parent=1 // pred_check
      _
    $region3: #{tpu_custom_call.1} parent=1 // pred_check_branch
      %9 = sbr.rel (0) target = $region5
    $region4: #{tpu_custom_call.1} parent=1 // pred_region
      _
    $region5: #{tpu_custom_call.1} parent=1 // pred_fallthru
      _
    // Predicated region
    $region6: #{tpu_custom_call.1} parent=1 // pred_check
      _
    $region7: #{tpu_custom_call.1} parent=1 // pred_check_branch
      %11 = sbr.rel (0) target = $region9
    $region8: #{tpu_custom_call.1} parent=1 // pred_region
      _
    $region9: #{tpu_custom_call.1} parent=1 // pred_fallthru
      _
    %v12 = vld [vmem:[%s0] sm:$0xff]
    %v13 = vld [vmem:[%s0 + $0x8] sm:$0xff]
    %v14 = vld [vmem:[%s1] sm:$0xff]
    %v15 = vld [vmem:[%s1 + $0x8] sm:$0xff]
    %v16 = vlaneseq
    %v17 = vand.u32 %v16, 127
    %18 = vset.pattern.permute.xlu0 0
    %19 = vperm.xlu0 %18, %v12
    %v20 = vpop.permute.xlu0 %19
    %21 = vset.pattern.permute.xlu0 0
    %22 = vperm.xlu0 %21, %v13
    %v23 = vpop.permute.xlu0 %22
    %vm24 = vcmp.eq.s32.totalorder %v17, %v20
    %vm25 = vcmp.eq.s32.totalorder %v17, %v23
    %v26 = vadd.s32 %v12, 4
    %v27 = vadd.s32 %v13, 4
    %28 = vset.pattern.permute.xlu0 1
    %29 = vperm.xlu0 %28, %v26
    %v30 = vpop.permute.xlu0 %29
    %31 = vset.pattern.permute.xlu0 1
    %32 = vperm.xlu0 %31, %v27
    %v33 = vpop.permute.xlu0 %32
    %vm34 = vcmp.eq.s32.totalorder %v17, %v30
    %vm35 = vcmp.eq.s32.totalorder %v17, %v33
    %vm36 = vmor %vm24, %vm34
    %vm37 = vmor %vm25, %vm35
    %v38 = vadd.s32 %v12, 8
    %v39 = vadd.s32 %v13, 8
    %40 = vset.pattern.permute.xlu0 2
    %41 = vperm.xlu0 %40, %v38
    %v42 = vpop.permute.xlu0 %41
    %43 = vset.pattern.permute.xlu0 2
    %44 = vperm.xlu0 %43, %v39
    %v45 = vpop.permute.xlu0 %44
    %vm46 = vcmp.eq.s32.totalorder %v17, %v42
    %vm47 = vcmp.eq.s32.totalorder %v17, %v45
    %vm48 = vmor %vm36, %vm46
    %vm49 = vmor %vm37, %vm47
    %v50 = vadd.s32 %v12, 12
    %v51 = vadd.s32 %v13, 12
    %52 = vset.pattern.permute.xlu0 3
    %53 = vperm.xlu0 %52, %v50
    %v54 = vpop.permute.xlu0 %53
    %55 = vset.pattern.permute.xlu0 3
    %56 = vperm.xlu0 %55, %v51
    %v57 = vpop.permute.xlu0 %56
    %vm58 = vcmp.eq.s32.totalorder %v17, %v54
    %vm59 = vcmp.eq.s32.totalorder %v17, %v57
    %vm60 = vmor %vm48, %vm58
    %vm61 = vmor %vm49, %vm59
    %v62 = vsel %vm60, 1, 0
    %v63 = vsel %vm61, 1, 0
    %v64 = vcvt.s32.f32 %v62
    %v65 = vcvt.s32.f32 %v63
    %vm66 = vcmask 130048
    %v68 = vsel %vm66, %v64, 0
    %v71 = vsel %vm66, %v65, 0
    %73 = vmatprep.subr.mxu0 0.0
    %74 = vmatpush1.msra.mxu0 0.0
    %75 = vmatprep.subr.mxu0 0.0
    %76 = vmatpush1.msra.mxu0 0.0
    %77 = vmatprep.subr.mxu0 0.0
    %78 = vmatpush1.msra.mxu0 0.0
    %79 = vmatprep.subr.mxu0 0.0
    %80 = vmatpush1.msra.mxu0 0.0
    %81 = vmatprep.subr.mxu0 0.0
    %82 = vmatpush1.msra.mxu0 0.0
    %83 = vmatprep.subr.mxu0 0.0
    %84 = vmatpush1.msra.mxu0 0.0
    %85 = vmatprep.subr.mxu0 0.0
    %86 = vmatpush1.msra.mxu0 0.0
    %87 = vmatprep.subr.mxu0 0.0
    %88 = vmatpush1.msra.mxu0 0.0
    %89 = vmatprep.subr.mxu0 0.0
    %90 = vmatpush1.msra.mxu0 0.0
    %91 = vmatprep.subr.mxu0 0.0
    %92 = vmatpush1.msra.mxu0 0.0
    %93 = vmatprep.subr.mxu0 0.0
    %94 = vmatpush1.msra.mxu0 0.0
    %95 = vmatprep.subr.mxu0 0.0
    %96 = vmatpush1.msra.mxu0 0.0
    %97 = vmatprep.subr.mxu0 0.0
    %98 = vmatpush1.msra.mxu0 0.0
    %99 = vmatprep.subr.mxu0 0.0
    %100 = vmatpush1.msra.mxu0 0.0
    %101 = vmatprep.subr.mxu0 0.0
    %102 = vmatpush1.msra.mxu0 %v15
    %103 = vmatprep.subr.mxu0 0.0
    %104 = vmatpush1.msra.mxu0 %v14
    %105 = vmatprep.subr.mxu0 0.0
    %106 = vmatpush2.msra.mxu0 0.0
    %107 = vmatprep.subr.mxu0 0.0
    %108 = vmatpush2.msra.mxu0 0.0
    %109 = vmatprep.subr.mxu0 0.0
    %110 = vmatpush2.msra.mxu0 0.0
    %111 = vmatprep.subr.mxu0 0.0
    %112 = vmatpush2.msra.mxu0 0.0
    %113 = vmatprep.subr.mxu0 0.0
    %114 = vmatpush2.msra.mxu0 0.0
    %115 = vmatprep.subr.mxu0 0.0
    %116 = vmatpush2.msra.mxu0 0.0
    %117 = vmatprep.subr.mxu0 0.0
    %118 = vmatpush2.msra.mxu0 0.0
    %119 = vmatprep.subr.mxu0 0.0
    %120 = vmatpush2.msra.mxu0 0.0
    %121 = vmatprep.subr.mxu0 0.0
    %122 = vmatpush2.msra.mxu0 0.0
    %123 = vmatprep.subr.mxu0 0.0
    %124 = vmatpush2.msra.mxu0 0.0
    %125 = vmatprep.subr.mxu0 0.0
    %126 = vmatpush2.msra.mxu0 0.0
    %127 = vmatprep.subr.mxu0 0.0
    %128 = vmatpush2.msra.mxu0 0.0
    %129 = vmatprep.subr.mxu0 0.0
    %130 = vmatpush2.msra.mxu0 0.0
    %131 = vmatprep.subr.mxu0 0.0
    %132 = vmatpush2.msra.mxu0 0.0
    %133 = vmatprep.subr.mxu0 0.0
    %134 = vmatpush2.msra.mxu0 0.0
    %135 = vmatprep.subr.mxu0 0.0
    %136 = vmatpush2.msra.mxu0 0.0
    %137 = vmatprep.mubr.f32.mxu0 0.0
    %138 = vmatmul.mubr.f32.gmra.mxu0 %v68
    %v139 = vpop.f32.mrf.mxu0
    %v140 = vadd.f32 0.0, %v139
    %v141 = vpop.f32.mrf.mxu0
    %142 = vmatprep.mubr.f32.mxu0 0.0
    %143 = vmatmul.mubr.f32.gmra.mxu0 %v71
    %v144 = vpop.f32.mrf.mxu0
    %v145 = vadd.f32 0.0, %v144
    %v146 = vpop.f32.mrf.mxu0
    %147 = vdwg.mxu0
    %148 = vst [vmem:[#allocation2] sm:$0xff] %v140
    %149 = vst [vmem:[#allocation2 + $0x8] sm:$0xff] %v145
    // Predicated region
    $region10: #{tpu_custom_call.1} parent=1 // pred_check
      _
    $region11: #{tpu_custom_call.1} parent=1 // pred_check_branch
      %151 = sbr.rel (0) target = $region13
    $region12: #{tpu_custom_call.1} parent=1 // pred_region
      %s153 = ssub.s32 256, 256
      %154 = vsyncadd [#allocation3], %s153
      %s155 = sshll.u32 [#allocation2], 4
      %s156 = int_to_ptr.vmem [resolvable:$true] %s155
      %161 = dma.vmem_to_hbm [thread:$0]  %s156, 256, %s2, [#allocation3], 128, 128, 8
    $region13: #{tpu_custom_call.1} parent=1 // pred_fallthru
      _
    // Predicated region
    $region14: #{tpu_custom_call.1} parent=1 // pred_check
      _
    $region15: #{tpu_custom_call.1} parent=1 // pred_check_branch
      %163 = sbr.rel (0) target = $region17
    $region16: #{tpu_custom_call.1} parent=1 // pred_region
      %164 = dma.done [#allocation3], 256
    $region17: #{tpu_custom_call.1} parent=1 // pred_fallthru
      _
    %165 = vsyncpa [#allocation3], 1

</llo_original>
